<compile_context>
chip_gen: v5e
topology: v5e:2x2
jax: 0.10.0
libtpu: 0.0.40
codegen_flags: <defaults>
</compile_context>

<pallas_src>
import jax
import jax.numpy as jnp
from jax.experimental import pallas as pl
from jax.experimental.pallas import tpu as pltpu


# ----------------------------- configuration --------------------------------
class Opt:
    n_classes = 10
    label_dim = 8
    channels = 1
    img_size = 8            # prod(img_shape) = 64


OPT = Opt()
IN_CHANNELS = OPT.channels * OPT.img_size * OPT.img_size + OPT.label_dim  # 72
NOISE_DIM = IN_CHANNELS - 2 * OPT.label_dim                               # 56
HIDDEN = [128, 256, 512, 256, 128]
OUT_DIM = 1

IN_PAD = 128     # input features padded 72 -> 128 (lane-aligned K for layer 1)
OUT_PAD = 128    # output padded 1 -> 128 (lane-dense, unmasked stores)
MAX_TB = 128     # max batch tile (fills the MXU M dimension)


def _round_up(x, m):
    return ((x + m - 1) // m) * m


# ------------------------------ Pallas kernel --------------------------------
def _mlp_kernel(x_ref,
                w1_ref, b1_ref, w2_ref, b2_ref, w3_ref, b3_ref,
                w4_ref, b4_ref, w5_ref, b5_ref, w6_ref, b6_ref,
                out_ref):
    """Fused MLP: 5x (Linear + LeakyReLU(0.2)) + Linear + Sigmoid.

    Matmuls run in bf16 on the MXU with f32 accumulation; pointwise math
    (bias add, LeakyReLU, sigmoid) is done in f32.
    """
    def layer(h_bf16, w_ref, b_ref):
        acc = jnp.dot(h_bf16, w_ref[...], preferred_element_type=jnp.float32)
        return acc + b_ref[...]

    def leaky_relu(v):
        # max(v, 0.2*v) == LeakyReLU(0.2): one vmul + one vmax on the VPU.
        return jnp.maximum(v, 0.2 * v)

    h = x_ref[...]                                          # bf16 (TB, IN_PAD)
    h = leaky_relu(layer(h, w1_ref, b1_ref)).astype(jnp.bfloat16)
    h = leaky_relu(layer(h, w2_ref, b2_ref)).astype(jnp.bfloat16)
    h = leaky_relu(layer(h, w3_ref, b3_ref)).astype(jnp.bfloat16)
    h = leaky_relu(layer(h, w4_ref, b4_ref)).astype(jnp.bfloat16)
    h = leaky_relu(layer(h, w5_ref, b5_ref)).astype(jnp.bfloat16)
    logits = layer(h, w6_ref, b6_ref)                       # f32 (TB, OUT_PAD)
    out_ref[...] = jax.nn.sigmoid(logits)


def _run_mlp(x_pad_bf16, padded_layers, b_pad, tb):
    """pallas_call wrapper.

    x_pad_bf16    : (b_pad, IN_PAD) bf16, b_pad % tb == 0
    padded_layers : list of 6 (W_bf16, b_f32) with lane-aligned shapes
    """
    grid = (b_pad // tb,)

    in_specs = [pl.BlockSpec((tb, IN_PAD), lambda i: (i, 0))]
    flat_params = []
    for (w, bias) in padded_layers:
        # Constant index_map -> weights/biases DMA'd once, resident in VMEM.
        in_specs.append(pl.BlockSpec(w.shape, lambda i: (0, 0)))
        in_specs.append(pl.BlockSpec(bias.shape, lambda i: (0, 0)))
        flat_params.append(w)
        flat_params.append(bias)

    out_spec = pl.BlockSpec((tb, OUT_PAD), lambda i: (i, 0))

    # Advisory cost estimate so XLA schedules around the custom call sensibly.
    flops = 2 * b_pad * sum(int(w.shape[0]) * int(w.shape[1])
                            for (w, _) in padded_layers)
    bytes_accessed = (x_pad_bf16.size * 2
                      + sum(w.size * 2 + bias.size * 4
                            for (w, bias) in padded_layers)
                      + b_pad * OUT_PAD * 4)
    cost = pl.CostEstimate(flops=flops,
                           transcendentals=b_pad * OUT_PAD,
                           bytes_accessed=bytes_accessed)

    return pl.pallas_call(
        _mlp_kernel,
        out_shape=jax.ShapeDtypeStruct((b_pad, OUT_PAD), jnp.float32),
        grid=grid,
        in_specs=in_specs,
        out_specs=out_spec,
        compiler_params=pltpu.CompilerParams(
            dimension_semantics=("parallel",)),
        cost_estimate=cost,
    )(x_pad_bf16, *flat_params)


# --------------------------- parameter construction --------------------------
def init_params(seed=42):
    key = jax.random.PRNGKey(seed)
    keys = jax.random.split(key, 16)
    params = {}
    # nn.Embedding default init: N(0, 1)
    params["emb"] = jax.random.normal(
        keys[0], (OPT.n_classes, OPT.label_dim), dtype=jnp.float32)

    dims = [IN_CHANNELS] + HIDDEN + [OUT_DIM]
    layers = []
    for i in range(len(dims) - 1):
        fan_in, fan_out = dims[i], dims[i + 1]
        bound = 1.0 / float(jnp.sqrt(jnp.float32(fan_in)))
        w = jax.random.uniform(keys[1 + 2 * i], (fan_in, fan_out),
                               minval=-bound, maxval=bound, dtype=jnp.float32)
        bias = jax.random.uniform(keys[2 + 2 * i], (1, fan_out),
                                  minval=-bound, maxval=bound,
                                  dtype=jnp.float32)
        layers.append((w, bias))
    params["layers"] = layers
    return params


# ------------------------------- forward pass --------------------------------
@jax.jit
def generator1_forward(noise, label1, label2, emb, *flat_layer_params):
    # Embedding lookup (gather) + concat: plain-JAX glue.
    e1 = emb[label1.astype(jnp.int32)]
    e2 = emb[label2.astype(jnp.int32)]
    gen_input = jnp.concatenate([noise, e1, e2], axis=-1)   # (B, IN_CHANNELS)

    batch = gen_input.shape[0]
    # Batch tile: multiple of 8 sublanes, capped at MAX_TB.
    tb = min(MAX_TB, _round_up(batch, 8))
    b_pad = _round_up(batch, tb)

    # Lane-align input features (72 -> 128) and batch (-> multiple of tb).
    gen_input = jnp.pad(gen_input,
                        ((0, b_pad - batch), (0, IN_PAD - IN_CHANNELS)))
    x_bf16 = gen_input.astype(jnp.bfloat16)

    layers = [(flat_layer_params[2 * i], flat_layer_params[2 * i + 1])
              for i in range(len(flat_layer_params) // 2)]

    # Pad W1 rows (72 -> 128, zeros) and W6/b6 cols (1 -> 128) so every matmul
    # K/N dim is lane-aligned; cast weights to bf16 for the MXU.
    padded = []
    for idx, (w, bias) in enumerate(layers):
        if idx == 0:
            w = jnp.pad(w, ((0, IN_PAD - IN_CHANNELS), (0, 0)))
        if idx == len(layers) - 1:
            w = jnp.pad(w, ((0, 0), (0, OUT_PAD - OUT_DIM)))
            bias = jnp.pad(bias, ((0, 0), (0, OUT_PAD - OUT_DIM)))
        padded.append((w.astype(jnp.bfloat16), bias.astype(jnp.float32)))

    out_pad = _run_mlp(x_bf16, padded, b_pad, tb)           # (b_pad, OUT_PAD)
    return out_pad[:batch, :OUT_DIM]                        # (B, 1)


# ----------------------------------- main ------------------------------------
if __name__ == "__main__":
    B = 2
    params = init_params(seed=42)

    key = jax.random.PRNGKey(0)
    k_noise, k_l1, k_l2 = jax.random.split(key, 3)
    noise = jax.random.normal(k_noise, (B, NOISE_DIM), dtype=jnp.float32)
    label1 = jax.random.randint(k_l1, (B,), 0, OPT.n_classes, dtype=jnp.int32)
    label2 = jax.random.randint(k_l2, (B,), 0, OPT.n_classes, dtype=jnp.int32)

    flat = []
    for (w, bias) in params["layers"]:
        flat.append(w)
        flat.append(bias)

    out = generator1_forward(noise, label1, label2, params["emb"], *flat)
    out = jax.block_until_ready(out)

    assert out.shape == (B, 1), out.shape
    assert bool(jnp.all((out >= 0.0) & (out <= 1.0))), "sigmoid range violated"
    print("KERNEL_OK")
</pallas_src>

<mosaic_0001>
module attributes {stable_mosaic.version = 11 : i64} {
  func.func @_mlp_kernel(%arg0: i32, %arg1: memref<8x128xbf16, #tpu.memory_space<vmem>>, %arg2: memref<128x128xbf16, #tpu.memory_space<vmem>>, %arg3: memref<1x128xf32, #tpu.memory_space<vmem>>, %arg4: memref<128x256xbf16, #tpu.memory_space<vmem>>, %arg5: memref<1x256xf32, #tpu.memory_space<vmem>>, %arg6: memref<256x512xbf16, #tpu.memory_space<vmem>>, %arg7: memref<1x512xf32, #tpu.memory_space<vmem>>, %arg8: memref<512x256xbf16, #tpu.memory_space<vmem>>, %arg9: memref<1x256xf32, #tpu.memory_space<vmem>>, %arg10: memref<256x128xbf16, #tpu.memory_space<vmem>>, %arg11: memref<1x128xf32, #tpu.memory_space<vmem>>, %arg12: memref<128x128xbf16, #tpu.memory_space<vmem>>, %arg13: memref<1x128xf32, #tpu.memory_space<vmem>>, %arg14: memref<8x128xf32, #tpu.memory_space<vmem>>) attributes {dimension_semantics = [#tpu.dimension_semantics<parallel>], iteration_bounds = array<i64: 1>, scalar_prefetch = 0 : i64, scratch_operands = 0 : i64, tpu.core_type = #tpu.core_type<tc>, window_params = [{transform_indices = @transform_0, window_bounds = array<i64: 8, 128>}, {pipeline_mode = #tpu.pipeline_mode<synchronous>, transform_indices = @transform_1, window_bounds = array<i64: 128, 128>}, {pipeline_mode = #tpu.pipeline_mode<synchronous>, transform_indices = @transform_2, window_bounds = array<i64: 1, 128>}, {pipeline_mode = #tpu.pipeline_mode<synchronous>, transform_indices = @transform_3, window_bounds = array<i64: 128, 256>}, {pipeline_mode = #tpu.pipeline_mode<synchronous>, transform_indices = @transform_4, window_bounds = array<i64: 1, 256>}, {pipeline_mode = #tpu.pipeline_mode<synchronous>, transform_indices = @transform_5, window_bounds = array<i64: 256, 512>}, {pipeline_mode = #tpu.pipeline_mode<synchronous>, transform_indices = @transform_6, window_bounds = array<i64: 1, 512>}, {pipeline_mode = #tpu.pipeline_mode<synchronous>, transform_indices = @transform_7, window_bounds = array<i64: 512, 256>}, {pipeline_mode = #tpu.pipeline_mode<synchronous>, transform_indices = @transform_8, window_bounds = array<i64: 1, 256>}, {pipeline_mode = #tpu.pipeline_mode<synchronous>, transform_indices = @transform_9, window_bounds = array<i64: 256, 128>}, {pipeline_mode = #tpu.pipeline_mode<synchronous>, transform_indices = @transform_10, window_bounds = array<i64: 1, 128>}, {pipeline_mode = #tpu.pipeline_mode<synchronous>, transform_indices = @transform_11, window_bounds = array<i64: 128, 128>}, {pipeline_mode = #tpu.pipeline_mode<synchronous>, transform_indices = @transform_12, window_bounds = array<i64: 1, 128>}, {transform_indices = @transform_13, window_bounds = array<i64: 8, 128>}]} {
    %c0 = arith.constant 0 : index
    %c0_0 = arith.constant 0 : index
    %0 = vector.load %arg1[%c0, %c0_0] : memref<8x128xbf16, #tpu.memory_space<vmem>>, vector<8x128xbf16>
    %c0_1 = arith.constant 0 : index
    %c0_2 = arith.constant 0 : index
    %1 = vector.load %arg2[%c0_1, %c0_2] : memref<128x128xbf16, #tpu.memory_space<vmem>>, vector<128x128xbf16>
    %cst = arith.constant dense<0.000000e+00> : vector<8x128xf32>
    %2 = tpu.matmul %0, %1, %cst {dimension_numbers = #tpu.dot_dimension_numbers<[1], [0], [0], [1], [0, 0, 1, 1], [], []>} : vector<8x128xbf16>, vector<128x128xbf16>, vector<8x128xf32> -> vector<8x128xf32>
    %c0_3 = arith.constant 0 : index
    %c0_4 = arith.constant 0 : index
    %3 = vector.load %arg3[%c0_3, %c0_4] : memref<1x128xf32, #tpu.memory_space<vmem>>, vector<1x128xf32>
    %4 = vector.broadcast %3 : vector<1x128xf32> to vector<8x128xf32>
    %5 = arith.addf %2, %4 : vector<8x128xf32>
    %cst_5 = arith.constant 2.000000e-01 : f32
    %6 = vector.broadcast %cst_5 : f32 to vector<8x128xf32>
    %7 = arith.mulf %6, %5 : vector<8x128xf32>
    %8 = arith.maximumf %5, %7 : vector<8x128xf32>
    %9 = arith.truncf %8 : vector<8x128xf32> to vector<8x128xbf16>
    %c0_6 = arith.constant 0 : index
    %c0_7 = arith.constant 0 : index
    %10 = vector.load %arg4[%c0_6, %c0_7] : memref<128x256xbf16, #tpu.memory_space<vmem>>, vector<128x256xbf16>
    %cst_8 = arith.constant dense<0.000000e+00> : vector<8x256xf32>
    %11 = tpu.matmul %9, %10, %cst_8 {dimension_numbers = #tpu.dot_dimension_numbers<[1], [0], [0], [1], [0, 0, 1, 1], [], []>} : vector<8x128xbf16>, vector<128x256xbf16>, vector<8x256xf32> -> vector<8x256xf32>
    %c0_9 = arith.constant 0 : index
    %c0_10 = arith.constant 0 : index
    %12 = vector.load %arg5[%c0_9, %c0_10] : memref<1x256xf32, #tpu.memory_space<vmem>>, vector<1x256xf32>
    %13 = vector.broadcast %12 : vector<1x256xf32> to vector<8x256xf32>
    %14 = arith.addf %11, %13 : vector<8x256xf32>
    %cst_11 = arith.constant 2.000000e-01 : f32
    %15 = vector.broadcast %cst_11 : f32 to vector<8x256xf32>
    %16 = arith.mulf %15, %14 : vector<8x256xf32>
    %17 = arith.maximumf %14, %16 : vector<8x256xf32>
    %18 = arith.truncf %17 : vector<8x256xf32> to vector<8x256xbf16>
    %c0_12 = arith.constant 0 : index
    %c0_13 = arith.constant 0 : index
    %19 = vector.load %arg6[%c0_12, %c0_13] : memref<256x512xbf16, #tpu.memory_space<vmem>>, vector<256x512xbf16>
    %cst_14 = arith.constant dense<0.000000e+00> : vector<8x512xf32>
    %20 = tpu.matmul %18, %19, %cst_14 {dimension_numbers = #tpu.dot_dimension_numbers<[1], [0], [0], [1], [0, 0, 1, 1], [], []>} : vector<8x256xbf16>, vector<256x512xbf16>, vector<8x512xf32> -> vector<8x512xf32>
    %c0_15 = arith.constant 0 : index
    %c0_16 = arith.constant 0 : index
    %21 = vector.load %arg7[%c0_15, %c0_16] : memref<1x512xf32, #tpu.memory_space<vmem>>, vector<1x512xf32>
    %22 = vector.broadcast %21 : vector<1x512xf32> to vector<8x512xf32>
    %23 = arith.addf %20, %22 : vector<8x512xf32>
    %cst_17 = arith.constant 2.000000e-01 : f32
    %24 = vector.broadcast %cst_17 : f32 to vector<8x512xf32>
    %25 = arith.mulf %24, %23 : vector<8x512xf32>
    %26 = arith.maximumf %23, %25 : vector<8x512xf32>
    %27 = arith.truncf %26 : vector<8x512xf32> to vector<8x512xbf16>
    %c0_18 = arith.constant 0 : index
    %c0_19 = arith.constant 0 : index
    %28 = vector.load %arg8[%c0_18, %c0_19] : memref<512x256xbf16, #tpu.memory_space<vmem>>, vector<512x256xbf16>
    %cst_20 = arith.constant dense<0.000000e+00> : vector<8x256xf32>
    %29 = tpu.matmul %27, %28, %cst_20 {dimension_numbers = #tpu.dot_dimension_numbers<[1], [0], [0], [1], [0, 0, 1, 1], [], []>} : vector<8x512xbf16>, vector<512x256xbf16>, vector<8x256xf32> -> vector<8x256xf32>
    %c0_21 = arith.constant 0 : index
    %c0_22 = arith.constant 0 : index
    %30 = vector.load %arg9[%c0_21, %c0_22] : memref<1x256xf32, #tpu.memory_space<vmem>>, vector<1x256xf32>
    %31 = vector.broadcast %30 : vector<1x256xf32> to vector<8x256xf32>
    %32 = arith.addf %29, %31 : vector<8x256xf32>
    %cst_23 = arith.constant 2.000000e-01 : f32
    %33 = vector.broadcast %cst_23 : f32 to vector<8x256xf32>
    %34 = arith.mulf %33, %32 : vector<8x256xf32>
    %35 = arith.maximumf %32, %34 : vector<8x256xf32>
    %36 = arith.truncf %35 : vector<8x256xf32> to vector<8x256xbf16>
    %c0_24 = arith.constant 0 : index
    %c0_25 = arith.constant 0 : index
    %37 = vector.load %arg10[%c0_24, %c0_25] : memref<256x128xbf16, #tpu.memory_space<vmem>>, vector<256x128xbf16>
    %cst_26 = arith.constant dense<0.000000e+00> : vector<8x128xf32>
    %38 = tpu.matmul %36, %37, %cst_26 {dimension_numbers = #tpu.dot_dimension_numbers<[1], [0], [0], [1], [0, 0, 1, 1], [], []>} : vector<8x256xbf16>, vector<256x128xbf16>, vector<8x128xf32> -> vector<8x128xf32>
    %c0_27 = arith.constant 0 : index
    %c0_28 = arith.constant 0 : index
    %39 = vector.load %arg11[%c0_27, %c0_28] : memref<1x128xf32, #tpu.memory_space<vmem>>, vector<1x128xf32>
    %40 = vector.broadcast %39 : vector<1x128xf32> to vector<8x128xf32>
    %41 = arith.addf %38, %40 : vector<8x128xf32>
    %cst_29 = arith.constant 2.000000e-01 : f32
    %42 = vector.broadcast %cst_29 : f32 to vector<8x128xf32>
    %43 = arith.mulf %42, %41 : vector<8x128xf32>
    %44 = arith.maximumf %41, %43 : vector<8x128xf32>
    %45 = arith.truncf %44 : vector<8x128xf32> to vector<8x128xbf16>
    %c0_30 = arith.constant 0 : index
    %c0_31 = arith.constant 0 : index
    %46 = vector.load %arg12[%c0_30, %c0_31] : memref<128x128xbf16, #tpu.memory_space<vmem>>, vector<128x128xbf16>
    %cst_32 = arith.constant dense<0.000000e+00> : vector<8x128xf32>
    %47 = tpu.matmul %45, %46, %cst_32 {dimension_numbers = #tpu.dot_dimension_numbers<[1], [0], [0], [1], [0, 0, 1, 1], [], []>} : vector<8x128xbf16>, vector<128x128xbf16>, vector<8x128xf32> -> vector<8x128xf32>
    %c0_33 = arith.constant 0 : index
    %c0_34 = arith.constant 0 : index
    %48 = vector.load %arg13[%c0_33, %c0_34] : memref<1x128xf32, #tpu.memory_space<vmem>>, vector<1x128xf32>
    %49 = vector.broadcast %48 : vector<1x128xf32> to vector<8x128xf32>
    %50 = arith.addf %47, %49 : vector<8x128xf32>
    %51 = arith.negf %50 : vector<8x128xf32>
    %52 = math.exp %51 : vector<8x128xf32>
    %cst_35 = arith.constant 1.000000e+00 : f32
    %53 = vector.broadcast %cst_35 : f32 to vector<8x128xf32>
    %54 = arith.addf %53, %52 : vector<8x128xf32>
    %55 = arith.divf %53, %54 : vector<8x128xf32>
    %c0_36 = arith.constant 0 : index
    %c0_37 = arith.constant 0 : index
    %56 = vector.load %arg14[%c0_36, %c0_37] : memref<8x128xf32, #tpu.memory_space<vmem>>, vector<8x128xf32>
    tpu.vector_store %arg14[%c0_36, %c0_37], %55 {strides = array<i32>} : memref<8x128xf32, #tpu.memory_space<vmem>>, vector<8x128xf32>,
    return
  }
  func.func @transform_0(%arg0: i32) -> (i32, i32) {
    %c0_i32 = arith.constant 0 : i32
    %c0_i32_0 = arith.constant 0 : i32
    return %arg0, %c0_i32 : i32, i32
  }
  func.func @transform_1(%arg0: i32) -> (i32, i32) {
    %c0_i32 = arith.constant 0 : i32
    %c0_i32_0 = arith.constant 0 : i32
    %c0_i32_1 = arith.constant 0 : i32
    return %c0_i32, %c0_i32_0 : i32, i32
  }
  func.func @transform_2(%arg0: i32) -> (i32, i32) {
    %c0_i32 = arith.constant 0 : i32
    %c0_i32_0 = arith.constant 0 : i32
    %c0_i32_1 = arith.constant 0 : i32
    return %c0_i32, %c0_i32_0 : i32, i32
  }
  func.func @transform_3(%arg0: i32) -> (i32, i32) {
    %c0_i32 = arith.constant 0 : i32
    %c0_i32_0 = arith.constant 0 : i32
    %c0_i32_1 = arith.constant 0 : i32
    return %c0_i32, %c0_i32_0 : i32, i32
  }
  func.func @transform_4(%arg0: i32) -> (i32, i32) {
    %c0_i32 = arith.constant 0 : i32
    %c0_i32_0 = arith.constant 0 : i32
    %c0_i32_1 = arith.constant 0 : i32
    return %c0_i32, %c0_i32_0 : i32, i32
  }
  func.func @transform_5(%arg0: i32) -> (i32, i32) {
    %c0_i32 = arith.constant 0 : i32
    %c0_i32_0 = arith.constant 0 : i32
    %c0_i32_1 = arith.constant 0 : i32
    return %c0_i32, %c0_i32_0 : i32, i32
  }
  func.func @transform_6(%arg0: i32) -> (i32, i32) {
    %c0_i32 = arith.constant 0 : i32
    %c0_i32_0 = arith.constant 0 : i32
    %c0_i32_1 = arith.constant 0 : i32
    return %c0_i32, %c0_i32_0 : i32, i32
  }
  func.func @transform_7(%arg0: i32) -> (i32, i32) {
    %c0_i32 = arith.constant 0 : i32
    %c0_i32_0 = arith.constant 0 : i32
    %c0_i32_1 = arith.constant 0 : i32
    return %c0_i32, %c0_i32_0 : i32, i32
  }
  func.func @transform_8(%arg0: i32) -> (i32, i32) {
    %c0_i32 = arith.constant 0 : i32
    %c0_i32_0 = arith.constant 0 : i32
    %c0_i32_1 = arith.constant 0 : i32
    return %c0_i32, %c0_i32_0 : i32, i32
  }
  func.func @transform_9(%arg0: i32) -> (i32, i32) {
    %c0_i32 = arith.constant 0 : i32
    %c0_i32_0 = arith.constant 0 : i32
    %c0_i32_1 = arith.constant 0 : i32
    return %c0_i32, %c0_i32_0 : i32, i32
  }
  func.func @transform_10(%arg0: i32) -> (i32, i32) {
    %c0_i32 = arith.constant 0 : i32
    %c0_i32_0 = arith.constant 0 : i32
    %c0_i32_1 = arith.constant 0 : i32
    return %c0_i32, %c0_i32_0 : i32, i32
  }
  func.func @transform_11(%arg0: i32) -> (i32, i32) {
    %c0_i32 = arith.constant 0 : i32
    %c0_i32_0 = arith.constant 0 : i32
    %c0_i32_1 = arith.constant 0 : i32
    return %c0_i32, %c0_i32_0 : i32, i32
  }
  func.func @transform_12(%arg0: i32) -> (i32, i32) {
    %c0_i32 = arith.constant 0 : i32
    %c0_i32_0 = arith.constant 0 : i32
    %c0_i32_1 = arith.constant 0 : i32
    return %c0_i32, %c0_i32_0 : i32, i32
  }
  func.func @transform_13(%arg0: i32) -> (i32, i32) {
    %c0_i32 = arith.constant 0 : i32
    %c0_i32_0 = arith.constant 0 : i32
    return %arg0, %c0_i32 : i32, i32
  }
}

</mosaic_0001>

<llo_original>
// kernel: generator1_forward.1
$region0: #{generator1_forward.1}
  #allocation0 [shape = 'u32[]', space=smem, size = 0x4, offset = 0x4, fixed_abs, tag = 'smem constant byte address 0x4 - core index']
  #allocation1 [shape = 'u32[72,128]{1,0:T(1,128)}', space=vmem, size = 0x9000, scoped, tag = 'internal scratch']
  %s0 = inlined_call_operand.vmem [shape: bf16[8,128], index: 0, kind: input, shape index: {}]
  %s1 = inlined_call_operand.vmem [shape: bf16[128,128], index: 1, kind: input, shape index: {}]
  %s2 = inlined_call_operand.vmem [shape: f32[1,128], index: 2, kind: input, shape index: {}]
  %s3 = inlined_call_operand.vmem [shape: bf16[128,256], index: 3, kind: input, shape index: {}]
  %s4 = inlined_call_operand.vmem [shape: f32[1,256], index: 4, kind: input, shape index: {}]
  %s5 = inlined_call_operand.vmem [shape: bf16[256,512], index: 5, kind: input, shape index: {}]
  %s6 = inlined_call_operand.vmem [shape: f32[1,512], index: 6, kind: input, shape index: {}]
  %s7 = inlined_call_operand.vmem [shape: bf16[512,256], index: 7, kind: input, shape index: {}]
  %s8 = inlined_call_operand.vmem [shape: f32[1,256], index: 8, kind: input, shape index: {}]
  %s9 = inlined_call_operand.vmem [shape: bf16[256,128], index: 9, kind: input, shape index: {}]
  %s10 = inlined_call_operand.vmem [shape: f32[1,128], index: 10, kind: input, shape index: {}]
  %s11 = inlined_call_operand.vmem [shape: bf16[128,128], index: 11, kind: input, shape index: {}]
  %s12 = inlined_call_operand.vmem [shape: f32[1,128], index: 12, kind: input, shape index: {}]
  %s13 = inlined_call_operand.vmem [shape: f32[8,128], index: 13, kind: output, shape index: {}]
  %s14 = sld [smem:[#allocation0]]
  $region62: #{generator1_forward.1} parent=0
    _
  %s16 = ssub.s32 1, %s14
  %s17 = scalar_select 0, %s16, %s14
  // Predicated region
  $region2: #{generator1_forward.1} parent=0 // pred_check
    _
  $region3: #{generator1_forward.1} parent=0 // pred_check_branch
    %19 = sbr.rel (0) target = $region5
  $region4: #{generator1_forward.1} parent=0 // pred_region
    _
  $region5: #{generator1_forward.1} parent=0 // pred_fallthru
    _
  // Predicated region
  $region6: #{generator1_forward.1} parent=0 // pred_check
    _
  $region7: #{generator1_forward.1} parent=0 // pred_check_branch
    %21 = sbr.rel (0) target = $region9
  $region8: #{generator1_forward.1} parent=0 // pred_region
    _
  $region9: #{generator1_forward.1} parent=0 // pred_fallthru
    _
  // Predicated region
  $region10: #{generator1_forward.1} parent=0 // pred_check
    _
  $region11: #{generator1_forward.1} parent=0 // pred_check_branch
    %23 = sbr.rel (0) target = $region13
  $region12: #{generator1_forward.1} parent=0 // pred_region
    _
  $region13: #{generator1_forward.1} parent=0 // pred_fallthru
    _
  // Predicated region
  $region14: #{generator1_forward.1} parent=0 // pred_check
    _
  $region15: #{generator1_forward.1} parent=0 // pred_check_branch
    %25 = sbr.rel (0) target = $region17
  $region16: #{generator1_forward.1} parent=0 // pred_region
    _
  $region17: #{generator1_forward.1} parent=0 // pred_fallthru
    _
  // Predicated region
  $region18: #{generator1_forward.1} parent=0 // pred_check
    _
  $region19: #{generator1_forward.1} parent=0 // pred_check_branch
    %27 = sbr.rel (0) target = $region21
  $region20: #{generator1_forward.1} parent=0 // pred_region
    _
  $region21: #{generator1_forward.1} parent=0 // pred_fallthru
    _
  // Predicated region
  $region22: #{generator1_forward.1} parent=0 // pred_check
    _
  $region23: #{generator1_forward.1} parent=0 // pred_check_branch
    %29 = sbr.rel (0) target = $region25
  $region24: #{generator1_forward.1} parent=0 // pred_region
    _
  $region25: #{generator1_forward.1} parent=0 // pred_fallthru
    _
  // Predicated region
  $region26: #{generator1_forward.1} parent=0 // pred_check
    _
  $region27: #{generator1_forward.1} parent=0 // pred_check_branch
    %31 = sbr.rel (0) target = $region29
  $region28: #{generator1_forward.1} parent=0 // pred_region
    _
  $region29: #{generator1_forward.1} parent=0 // pred_fallthru
    _
  // Predicated region
  $region30: #{generator1_forward.1} parent=0 // pred_check
    _
  $region31: #{generator1_forward.1} parent=0 // pred_check_branch
    %33 = sbr.rel (0) target = $region33
  $region32: #{generator1_forward.1} parent=0 // pred_region
    _
  $region33: #{generator1_forward.1} parent=0 // pred_fallthru
    _
  // Predicated region
  $region34: #{generator1_forward.1} parent=0 // pred_check
    _
  $region35: #{generator1_forward.1} parent=0 // pred_check_branch
    %35 = sbr.rel (0) target = $region37
  $region36: #{generator1_forward.1} parent=0 // pred_region
    _
  $region37: #{generator1_forward.1} parent=0 // pred_fallthru
    _
  // Predicated region
  $region38: #{generator1_forward.1} parent=0 // pred_check
    _
  $region39: #{generator1_forward.1} parent=0 // pred_check_branch
    %37 = sbr.rel (0) target = $region41
  $region40: #{generator1_forward.1} parent=0 // pred_region
    _
  $region41: #{generator1_forward.1} parent=0 // pred_fallthru
    _
  // Predicated region
  $region42: #{generator1_forward.1} parent=0 // pred_check
    _
  $region43: #{generator1_forward.1} parent=0 // pred_check_branch
    %39 = sbr.rel (0) target = $region45
  $region44: #{generator1_forward.1} parent=0 // pred_region
    _
  $region45: #{generator1_forward.1} parent=0 // pred_fallthru
    _
  // Predicated region
  $region46: #{generator1_forward.1} parent=0 // pred_check
    _
  $region47: #{generator1_forward.1} parent=0 // pred_check_branch
    %41 = sbr.rel (0) target = $region49
  $region48: #{generator1_forward.1} parent=0 // pred_region
    _
  $region49: #{generator1_forward.1} parent=0 // pred_fallthru
    _
  // Predicated region
  $region50: #{generator1_forward.1} parent=0 // pred_check
    _
  $region51: #{generator1_forward.1} parent=0 // pred_check_branch
    %43 = sbr.rel (0) target = $region53
  $region52: #{generator1_forward.1} parent=0 // pred_region
    _
  $region53: #{generator1_forward.1} parent=0 // pred_fallthru
    _
  %v44 = vld [vmem:[%s0] sm:$0xf]
  %v45 = vld [vmem:[%s1] sm:$0xf]
  %v46 = vld [vmem:[%s1 + $0x4] sm:$0xf]
  %v47 = vld [vmem:[%s1 + $0x8] sm:$0xf]
  %v48 = vld [vmem:[%s1 + $0xc] sm:$0xf]
  %v49 = vld [vmem:[%s1 + $0x10] sm:$0xf]
  %v50 = vld [vmem:[%s1 + $0x14] sm:$0xf]
  %v51 = vld [vmem:[%s1 + $0x18] sm:$0xf]
  %v52 = vld [vmem:[%s1 + $0x1c] sm:$0xf]
  %v53 = vld [vmem:[%s1 + $0x20] sm:$0xf]
  %v54 = vld [vmem:[%s1 + $0x24] sm:$0xf]
  %v55 = vld [vmem:[%s1 + $0x28] sm:$0xf]
  %v56 = vld [vmem:[%s1 + $0x2c] sm:$0xf]
  %v57 = vld [vmem:[%s1 + $0x30] sm:$0xf]
  %v58 = vld [vmem:[%s1 + $0x34] sm:$0xf]
  %v59 = vld [vmem:[%s1 + $0x38] sm:$0xf]
  %v60 = vld [vmem:[%s1 + $0x3c] sm:$0xf]
  %v61 = vld [vmem:[%s2] sm:$0x1]
  %v63 = vperm.slane %v61, 0
  %v81 = vunpack.c.l.b16 %v45
  %v82 = vunpack.c.l.b16 %v46
  %v83 = vunpack.c.l.b16 %v47
  %v84 = vunpack.c.l.b16 %v48
  %v85 = vunpack.c.l.b16 %v49
  %v86 = vunpack.c.l.b16 %v50
  %v87 = vunpack.c.l.b16 %v51
  %v88 = vunpack.c.l.b16 %v52
  %v89 = vunpack.c.l.b16 %v53
  %v90 = vunpack.c.l.b16 %v54
  %v91 = vunpack.c.l.b16 %v55
  %v92 = vunpack.c.l.b16 %v56
  %v93 = vunpack.c.l.b16 %v57
  %v94 = vunpack.c.l.b16 %v58
  %v95 = vunpack.c.l.b16 %v59
  %v96 = vunpack.c.l.b16 %v60
  %v97 = vpack.c.b16 %v82, %v81
  %v98 = vpack.c.b16 %v84, %v83
  %v99 = vpack.c.b16 %v86, %v85
  %v100 = vpack.c.b16 %v88, %v87
  %v101 = vpack.c.b16 %v90, %v89
  %v102 = vpack.c.b16 %v92, %v91
  %v103 = vpack.c.b16 %v94, %v93
  %v104 = vpack.c.b16 %v96, %v95
  %113 = vmatpush.bf16.msra.mxu0 %v104
  %114 = vmatpush.bf16.msra.mxu0 %v103
  %115 = vmatpush.bf16.msra.mxu0 %v102
  %116 = vmatpush.bf16.msra.mxu0 %v101
  %117 = vmatpush.bf16.msra.mxu0 %v100
  %118 = vmatpush.bf16.msra.mxu0 %v99
  %119 = vmatpush.bf16.msra.mxu0 %v98
  %120 = vmatpush.bf16.msra.mxu0 %v97
  %121 = vmatmul.bf16.gmra.mxu0 %v44
  %v122 = vpop.f32.mrf.mxu0
  %v123 = vadd.f32 %v63, %v122
  %v124 = vpop.f32.mrf.mxu0
  %125 = vdwg.mxu0
  %v126 = vmul.f32 %v123, 0.2
  %v127 = vmax.f32 %v123, %v126
  %v128 = vpack.c.bf16 %v127, %v127
  %v129 = vld [vmem:[%s3] sm:$0xff]
  %v130 = vld [vmem:[%s3 + $0x8] sm:$0xff]
  %v131 = vld [vmem:[%s3 + $0x10] sm:$0xff]
  %v132 = vld [vmem:[%s3 + $0x18] sm:$0xff]
  %v133 = vld [vmem:[%s3 + $0x20] sm:$0xff]
  %v134 = vld [vmem:[%s3 + $0x28] sm:$0xff]
  %v135 = vld [vmem:[%s3 + $0x30] sm:$0xff]
  %v136 = vld [vmem:[%s3 + $0x38] sm:$0xff]
  %v137 = vld [vmem:[%s3 + $0x40] sm:$0xff]
  %v138 = vld [vmem:[%s3 + $0x48] sm:$0xff]
  %v139 = vld [vmem:[%s3 + $0x50] sm:$0xff]
  %v140 = vld [vmem:[%s3 + $0x58] sm:$0xff]
  %v141 = vld [vmem:[%s3 + $0x60] sm:$0xff]
  %v142 = vld [vmem:[%s3 + $0x68] sm:$0xff]
  %v143 = vld [vmem:[%s3 + $0x70] sm:$0xff]
  %v144 = vld [vmem:[%s3 + $0x78] sm:$0xff]
  %v145 = vld [vmem:[%s4] sm:$0x3]
  %v147 = vperm.slane %v145, 0
  %v148 = vperm.slane %v145, 1
  %v167 = vunpack.c.l.b16 %v129
  %v168 = vunpack.c.h.b16 %v129
  %v169 = vunpack.c.l.b16 %v130
  %v170 = vunpack.c.h.b16 %v130
  %v171 = vunpack.c.l.b16 %v131
  %v172 = vunpack.c.h.b16 %v131
  %v173 = vunpack.c.l.b16 %v132
  %v174 = vunpack.c.h.b16 %v132
  %v175 = vunpack.c.l.b16 %v133
  %v176 = vunpack.c.h.b16 %v133
  %v177 = vunpack.c.l.b16 %v134
  %v178 = vunpack.c.h.b16 %v134
  %v179 = vunpack.c.l.b16 %v135
  %v180 = vunpack.c.h.b16 %v135
  %v181 = vunpack.c.l.b16 %v136
  %v182 = vunpack.c.h.b16 %v136
  %v183 = vunpack.c.l.b16 %v137
  %v184 = vunpack.c.h.b16 %v137
  %v185 = vunpack.c.l.b16 %v138
  %v186 = vunpack.c.h.b16 %v138
  %v187 = vunpack.c.l.b16 %v139
  %v188 = vunpack.c.h.b16 %v139
  %v189 = vunpack.c.l.b16 %v140
  %v190 = vunpack.c.h.b16 %v140
  %v191 = vunpack.c.l.b16 %v141
  %v192 = vunpack.c.h.b16 %v141
  %v193 = vunpack.c.l.b16 %v142
  %v194 = vunpack.c.h.b16 %v142
  %v195 = vunpack.c.l.b16 %v143
  %v196 = vunpack.c.h.b16 %v143
  %v197 = vunpack.c.l.b16 %v144
  %v198 = vunpack.c.h.b16 %v144
  %v199 = vpack.c.b16 %v169, %v167
  %v200 = vpack.c.b16 %v170, %v168
  %v201 = vpack.c.b16 %v173, %v171
  %v202 = vpack.c.b16 %v174, %v172
  %v203 = vpack.c.b16 %v177, %v175
  %v204 = vpack.c.b16 %v178, %v176
  %v205 = vpack.c.b16 %v181, %v179
  %v206 = vpack.c.b16 %v182, %v180
  %v207 = vpack.c.b16 %v185, %v183
  %v208 = vpack.c.b16 %v186, %v184
  %v209 = vpack.c.b16 %v189, %v187
  %v210 = vpack.c.b16 %v190, %v188
  %v211 = vpack.c.b16 %v193, %v191
  %v212 = vpack.c.b16 %v194, %v192
  %v213 = vpack.c.b16 %v197, %v195
  %v214 = vpack.c.b16 %v198, %v196
  %231 = vmatpush.bf16.msra.mxu0 %v213
  %232 = vmatpush.bf16.msra.mxu0 %v211
  %233 = vmatpush.bf16.msra.mxu0 %v209
  %234 = vmatpush.bf16.msra.mxu0 %v207
  %235 = vmatpush.bf16.msra.mxu0 %v205
  %236 = vmatpush.bf16.msra.mxu0 %v203
  %237 = vmatpush.bf16.msra.mxu0 %v201
  %238 = vmatpush.bf16.msra.mxu0 %v199
  %239 = vmatmul.bf16.gmra.mxu0 %v128
  %v240 = vpop.f32.mrf.mxu0
  %v241 = vadd.f32 %v147, %v240
  %v242 = vpop.f32.mrf.mxu0
  %243 = vdwg.mxu0
  %244 = vmatpush.bf16.msra.mxu0 %v214
  %245 = vmatpush.bf16.msra.mxu0 %v212
  %246 = vmatpush.bf16.msra.mxu0 %v210
  %247 = vmatpush.bf16.msra.mxu0 %v208
  %248 = vmatpush.bf16.msra.mxu0 %v206
  %249 = vmatpush.bf16.msra.mxu0 %v204
  %250 = vmatpush.bf16.msra.mxu0 %v202
  %251 = vmatpush.bf16.msra.mxu0 %v200
  %252 = vmatmul.bf16.gmra.mxu0 %v128
  %v253 = vpop.f32.mrf.mxu0
  %v254 = vadd.f32 %v148, %v253
  %v255 = vpop.f32.mrf.mxu0
  %256 = vdwg.mxu0
  %v257 = vmul.f32 %v241, 0.2
  %v258 = vmul.f32 %v254, 0.2
  %v259 = vmax.f32 %v241, %v257
  %v260 = vmax.f32 %v254, %v258
  %v261 = vpack.c.bf16 %v259, %v259
  %v262 = vpack.c.bf16 %v260, %v260
  %v263 = vld [vmem:[%s5] sm:$0xff]
  %v264 = vld [vmem:[%s5 + $0x8] sm:$0xff]
  %v265 = vld [vmem:[%s5 + $0x10] sm:$0xff]
  %v266 = vld [vmem:[%s5 + $0x18] sm:$0xff]
  %v267 = vld [vmem:[%s5 + $0x20] sm:$0xff]
  %v268 = vld [vmem:[%s5 + $0x28] sm:$0xff]
  %v269 = vld [vmem:[%s5 + $0x30] sm:$0xff]
  %v270 = vld [vmem:[%s5 + $0x38] sm:$0xff]
  %v271 = vld [vmem:[%s5 + $0x40] sm:$0xff]
  %v272 = vld [vmem:[%s5 + $0x48] sm:$0xff]
  %v273 = vld [vmem:[%s5 + $0x50] sm:$0xff]
  %v274 = vld [vmem:[%s5 + $0x58] sm:$0xff]
  %v275 = vld [vmem:[%s5 + $0x60] sm:$0xff]
  %v276 = vld [vmem:[%s5 + $0x68] sm:$0xff]
  %v277 = vld [vmem:[%s5 + $0x70] sm:$0xff]
  %v278 = vld [vmem:[%s5 + $0x78] sm:$0xff]
  %v279 = vld [vmem:[%s5 + $0x80] sm:$0xff]
  %v280 = vld [vmem:[%s5 + $0x88] sm:$0xff]
  %v281 = vld [vmem:[%s5 + $0x90] sm:$0xff]
  %v282 = vld [vmem:[%s5 + $0x98] sm:$0xff]
  %v283 = vld [vmem:[%s5 + $0xa0] sm:$0xff]
  %v284 = vld [vmem:[%s5 + $0xa8] sm:$0xff]
  %v285 = vld [vmem:[%s5 + $0xb0] sm:$0xff]
  %v286 = vld [vmem:[%s5 + $0xb8] sm:$0xff]
  %v287 = vld [vmem:[%s5 + $0xc0] sm:$0xff]
  %v288 = vld [vmem:[%s5 + $0xc8] sm:$0xff]
  %v289 = vld [vmem:[%s5 + $0xd0] sm:$0xff]
  %v290 = vld [vmem:[%s5 + $0xd8] sm:$0xff]
  %v291 = vld [vmem:[%s5 + $0xe0] sm:$0xff]
  %v292 = vld [vmem:[%s5 + $0xe8] sm:$0xff]
  %v293 = vld [vmem:[%s5 + $0xf0] sm:$0xff]
  %v294 = vld [vmem:[%s5 + $0xf8] sm:$0xff]
  %v295 = vld [vmem:[%s5 + $0x100] sm:$0xff]
  %v296 = vld [vmem:[%s5 + $0x108] sm:$0xff]
  %v297 = vld [vmem:[%s5 + $0x110] sm:$0xff]
  %v298 = vld [vmem:[%s5 + $0x118] sm:$0xff]
  %v299 = vld [vmem:[%s5 + $0x120] sm:$0xff]
  %v300 = vld [vmem:[%s5 + $0x128] sm:$0xff]
  %v301 = vld [vmem:[%s5 + $0x130] sm:$0xff]
  %v302 = vld [vmem:[%s5 + $0x138] sm:$0xff]
  %v303 = vld [vmem:[%s5 + $0x140] sm:$0xff]
  %v304 = vld [vmem:[%s5 + $0x148] sm:$0xff]
  %v305 = vld [vmem:[%s5 + $0x150] sm:$0xff]
  %v306 = vld [vmem:[%s5 + $0x158] sm:$0xff]
  %v307 = vld [vmem:[%s5 + $0x160] sm:$0xff]
  %v308 = vld [vmem:[%s5 + $0x168] sm:$0xff]
  %v309 = vld [vmem:[%s5 + $0x170] sm:$0xff]
  %v310 = vld [vmem:[%s5 + $0x178] sm:$0xff]
  %v311 = vld [vmem:[%s5 + $0x180] sm:$0xff]
  %v312 = vld [vmem:[%s5 + $0x188] sm:$0xff]
  %v313 = vld [vmem:[%s5 + $0x190] sm:$0xff]
  %v314 = vld [vmem:[%s5 + $0x198] sm:$0xff]
  %v315 = vld [vmem:[%s5 + $0x1a0] sm:$0xff]
  %v316 = vld [vmem:[%s5 + $0x1a8] sm:$0xff]
  %v317 = vld [vmem:[%s5 + $0x1b0] sm:$0xff]
  %v318 = vld [vmem:[%s5 + $0x1b8] sm:$0xff]
  %v319 = vld [vmem:[%s5 + $0x1c0] sm:$0xff]
  %v320 = vld [vmem:[%s5 + $0x1c8] sm:$0xff]
  %v321 = vld [vmem:[%s5 + $0x1d0] sm:$0xff]
  %v322 = vld [vmem:[%s5 + $0x1d8] sm:$0xff]
  %v323 = vld [vmem:[%s5 + $0x1e0] sm:$0xff]
  %v324 = vld [vmem:[%s5 + $0x1e8] sm:$0xff]
  %v325 = vld [vmem:[%s5 + $0x1f0] sm:$0xff]
  %v326 = vld [vmem:[%s5 + $0x1f8] sm:$0xff]
  %v327 = vld [vmem:[%s6] sm:$0xf]
  %v329 = vperm.slane %v327, 0
  %v330 = vperm.slane %v327, 1
  %v331 = vperm.slane %v327, 2
  %v332 = vperm.slane %v327, 3
  %v401 = vunpack.c.l.b16 %v263
  %v402 = vunpack.c.h.b16 %v263
  %v403 = vunpack.c.l.b16 %v264
  %v404 = vunpack.c.h.b16 %v264
  %v405 = vunpack.c.l.b16 %v265
  %v406 = vunpack.c.h.b16 %v265
  %v407 = vunpack.c.l.b16 %v266
  %v408 = vunpack.c.h.b16 %v266
  %v409 = vunpack.c.l.b16 %v267
  %v410 = vunpack.c.h.b16 %v267
  %v411 = vunpack.c.l.b16 %v268
  %v412 = vunpack.c.h.b16 %v268
  %v413 = vunpack.c.l.b16 %v269
  %v414 = vunpack.c.h.b16 %v269
  %v415 = vunpack.c.l.b16 %v270
  %v416 = vunpack.c.h.b16 %v270
  %v417 = vunpack.c.l.b16 %v271
  %v418 = vunpack.c.h.b16 %v271
  %v419 = vunpack.c.l.b16 %v272
  %v420 = vunpack.c.h.b16 %v272
  %v421 = vunpack.c.l.b16 %v273
  %v422 = vunpack.c.h.b16 %v273
  %v423 = vunpack.c.l.b16 %v274
  %v424 = vunpack.c.h.b16 %v274
  %v425 = vunpack.c.l.b16 %v275
  %v426 = vunpack.c.h.b16 %v275
  %v427 = vunpack.c.l.b16 %v276
  %v428 = vunpack.c.h.b16 %v276
  %v429 = vunpack.c.l.b16 %v277
  %v430 = vunpack.c.h.b16 %v277
  %v431 = vunpack.c.l.b16 %v278
  %v432 = vunpack.c.h.b16 %v278
  %v433 = vunpack.c.l.b16 %v279
  %v434 = vunpack.c.h.b16 %v279
  %v435 = vunpack.c.l.b16 %v280
  %v436 = vunpack.c.h.b16 %v280
  %v437 = vunpack.c.l.b16 %v281
  %v438 = vunpack.c.h.b16 %v281
  %v439 = vunpack.c.l.b16 %v282
  %v440 = vunpack.c.h.b16 %v282
  %v441 = vunpack.c.l.b16 %v283
  %v442 = vunpack.c.h.b16 %v283
  %v443 = vunpack.c.l.b16 %v284
  %v444 = vunpack.c.h.b16 %v284
  %v445 = vunpack.c.l.b16 %v285
  %v446 = vunpack.c.h.b16 %v285
  %v447 = vunpack.c.l.b16 %v286
  %v448 = vunpack.c.h.b16 %v286
  %v449 = vunpack.c.l.b16 %v287
  %v450 = vunpack.c.h.b16 %v287
  %v451 = vunpack.c.l.b16 %v288
  %v452 = vunpack.c.h.b16 %v288
  %v453 = vunpack.c.l.b16 %v289
  %v454 = vunpack.c.h.b16 %v289
  %v455 = vunpack.c.l.b16 %v290
  %v456 = vunpack.c.h.b16 %v290
  %v457 = vunpack.c.l.b16 %v291
  %v458 = vunpack.c.h.b16 %v291
  %v459 = vunpack.c.l.b16 %v292
  %v460 = vunpack.c.h.b16 %v292
  %v461 = vunpack.c.l.b16 %v293
  %v462 = vunpack.c.h.b16 %v293
  %v463 = vunpack.c.l.b16 %v294
  %v464 = vunpack.c.h.b16 %v294
  %v465 = vunpack.c.l.b16 %v295
  %v466 = vunpack.c.h.b16 %v295
  %v467 = vunpack.c.l.b16 %v296
  %v468 = vunpack.c.h.b16 %v296
  %v469 = vunpack.c.l.b16 %v297
  %v470 = vunpack.c.h.b16 %v297
  %v471 = vunpack.c.l.b16 %v298
  %v472 = vunpack.c.h.b16 %v298
  %v473 = vunpack.c.l.b16 %v299
  %v474 = vunpack.c.h.b16 %v299
  %v475 = vunpack.c.l.b16 %v300
  %v476 = vunpack.c.h.b16 %v300
  %v477 = vunpack.c.l.b16 %v301
  %v478 = vunpack.c.h.b16 %v301
  %v479 = vunpack.c.l.b16 %v302
  %v480 = vunpack.c.h.b16 %v302
  %v481 = vunpack.c.l.b16 %v303
  %v482 = vunpack.c.h.b16 %v303
  %v483 = vunpack.c.l.b16 %v304
  %v484 = vunpack.c.h.b16 %v304
  %v485 = vunpack.c.l.b16 %v305
  %v486 = vunpack.c.h.b16 %v305
  %v487 = vunpack.c.l.b16 %v306
  %v488 = vunpack.c.h.b16 %v306
  %v489 = vunpack.c.l.b16 %v307
  %v490 = vunpack.c.h.b16 %v307
  %v491 = vunpack.c.l.b16 %v308
  %v492 = vunpack.c.h.b16 %v308
  %v493 = vunpack.c.l.b16 %v309
  %v494 = vunpack.c.h.b16 %v309
  %v495 = vunpack.c.l.b16 %v310
  %v496 = vunpack.c.h.b16 %v310
  %v497 = vunpack.c.l.b16 %v311
  %v498 = vunpack.c.h.b16 %v311
  %v499 = vunpack.c.l.b16 %v312
  %v500 = vunpack.c.h.b16 %v312
  %v501 = vunpack.c.l.b16 %v313
  %v502 = vunpack.c.h.b16 %v313
  %v503 = vunpack.c.l.b16 %v314
  %v504 = vunpack.c.h.b16 %v314
  %v505 = vunpack.c.l.b16 %v315
  %v506 = vunpack.c.h.b16 %v315
  %v507 = vunpack.c.l.b16 %v316
  %v508 = vunpack.c.h.b16 %v316
  %v509 = vunpack.c.l.b16 %v317
  %v510 = vunpack.c.h.b16 %v317
  %v511 = vunpack.c.l.b16 %v318
  %v512 = vunpack.c.h.b16 %v318
  %v513 = vunpack.c.l.b16 %v319
  %v514 = vunpack.c.h.b16 %v319
  %v515 = vunpack.c.l.b16 %v320
  %v516 = vunpack.c.h.b16 %v320
  %v517 = vunpack.c.l.b16 %v321
  %v518 = vunpack.c.h.b16 %v321
  %v519 = vunpack.c.l.b16 %v322
  %v520 = vunpack.c.h.b16 %v322
  %v521 = vunpack.c.l.b16 %v323
  %v522 = vunpack.c.h.b16 %v323
  %v523 = vunpack.c.l.b16 %v324
  %v524 = vunpack.c.h.b16 %v324
  %v525 = vunpack.c.l.b16 %v325
  %v526 = vunpack.c.h.b16 %v325
  %v527 = vunpack.c.l.b16 %v326
  %v528 = vunpack.c.h.b16 %v326
  %v529 = vpack.c.b16 %v405, %v401
  %v530 = vpack.c.b16 %v406, %v402
  %v531 = vpack.c.b16 %v407, %v403
  %v532 = vpack.c.b16 %v408, %v404
  %v533 = vpack.c.b16 %v413, %v409
  %v534 = vpack.c.b16 %v414, %v410
  %v535 = vpack.c.b16 %v415, %v411
  %v536 = vpack.c.b16 %v416, %v412
  %v537 = vpack.c.b16 %v421, %v417
  %v538 = vpack.c.b16 %v422, %v418
  %v539 = vpack.c.b16 %v423, %v419
  %v540 = vpack.c.b16 %v424, %v420
  %v541 = vpack.c.b16 %v429, %v425
  %v542 = vpack.c.b16 %v430, %v426
  %v543 = vpack.c.b16 %v431, %v427
  %v544 = vpack.c.b16 %v432, %v428
  %v545 = vpack.c.b16 %v437, %v433
  %v546 = vpack.c.b16 %v438, %v434
  %v547 = vpack.c.b16 %v439, %v435
  %v548 = vpack.c.b16 %v440, %v436
  %v549 = vpack.c.b16 %v445, %v441
  %v550 = vpack.c.b16 %v446, %v442
  %v551 = vpack.c.b16 %v447, %v443
  %v552 = vpack.c.b16 %v448, %v444
  %v553 = vpack.c.b16 %v453, %v449
  %v554 = vpack.c.b16 %v454, %v450
  %v555 = vpack.c.b16 %v455, %v451
  %v556 = vpack.c.b16 %v456, %v452
  %v557 = vpack.c.b16 %v461, %v457
  %v558 = vpack.c.b16 %v462, %v458
  %v559 = vpack.c.b16 %v463, %v459
  %v560 = vpack.c.b16 %v464, %v460
  %v561 = vpack.c.b16 %v469, %v465
  %v562 = vpack.c.b16 %v470, %v466
  %v563 = vpack.c.b16 %v471, %v467
  %v564 = vpack.c.b16 %v472, %v468
  %v565 = vpack.c.b16 %v477, %v473
  %v566 = vpack.c.b16 %v478, %v474
  %v567 = vpack.c.b16 %v479, %v475
  %v568 = vpack.c.b16 %v480, %v476
  %v569 = vpack.c.b16 %v485, %v481
  %v570 = vpack.c.b16 %v486, %v482
  %v571 = vpack.c.b16 %v487, %v483
  %v572 = vpack.c.b16 %v488, %v484
  %v573 = vpack.c.b16 %v493, %v489
  %v574 = vpack.c.b16 %v494, %v490
  %v575 = vpack.c.b16 %v495, %v491
  %v576 = vpack.c.b16 %v496, %v492
  %v577 = vpack.c.b16 %v501, %v497
  %v578 = vpack.c.b16 %v502, %v498
  %v579 = vpack.c.b16 %v503, %v499
  %v580 = vpack.c.b16 %v504, %v500
  %v581 = vpack.c.b16 %v509, %v505
  %v582 = vpack.c.b16 %v510, %v506
  %v583 = vpack.c.b16 %v511, %v507
  %v584 = vpack.c.b16 %v512, %v508
  %v585 = vpack.c.b16 %v517, %v513
  %v586 = vpack.c.b16 %v518, %v514
  %v587 = vpack.c.b16 %v519, %v515
  %v588 = vpack.c.b16 %v520, %v516
  %v589 = vpack.c.b16 %v525, %v521
  %v590 = vpack.c.b16 %v526, %v522
  %v591 = vpack.c.b16 %v527, %v523
  %v592 = vpack.c.b16 %v528, %v524
  %657 = vmatpush.bf16.msra.mxu0 %v557
  %658 = vmatpush.bf16.msra.mxu0 %v553
  %659 = vmatpush.bf16.msra.mxu0 %v549
  %660 = vmatpush.bf16.msra.mxu0 %v545
  %661 = vmatpush.bf16.msra.mxu0 %v541
  %662 = vmatpush.bf16.msra.mxu0 %v537
  %663 = vmatpush.bf16.msra.mxu0 %v533
  %664 = vmatpush.bf16.msra.mxu0 %v529
  %665 = vmatmul.bf16.gmra.mxu0 %v261
  %v666 = vpop.f32.mrf.mxu0
  %v667 = vadd.f32 %v329, %v666
  %v668 = vpop.f32.mrf.mxu0
  %669 = vdwg.mxu0
  %670 = vmatpush.bf16.msra.mxu0 %v589
  %671 = vmatpush.bf16.msra.mxu0 %v585
  %672 = vmatpush.bf16.msra.mxu0 %v581
  %673 = vmatpush.bf16.msra.mxu0 %v577
  %674 = vmatpush.bf16.msra.mxu0 %v573
  %675 = vmatpush.bf16.msra.mxu0 %v569
  %676 = vmatpush.bf16.msra.mxu0 %v565
  %677 = vmatpush.bf16.msra.mxu0 %v561
  %678 = vmatmul.bf16.gmra.mxu0 %v262
  %v679 = vpop.f32.mrf.mxu0
  %v680 = vadd.f32 %v667, %v679
  %v681 = vpop.f32.mrf.mxu0
  %682 = vdwg.mxu0
  %683 = vmatpush.bf16.msra.mxu0 %v558
  %684 = vmatpush.bf16.msra.mxu0 %v554
  %685 = vmatpush.bf16.msra.mxu0 %v550
  %686 = vmatpush.bf16.msra.mxu0 %v546
  %687 = vmatpush.bf16.msra.mxu0 %v542
  %688 = vmatpush.bf16.msra.mxu0 %v538
  %689 = vmatpush.bf16.msra.mxu0 %v534
  %690 = vmatpush.bf16.msra.mxu0 %v530
  %691 = vmatmul.bf16.gmra.mxu0 %v261
  %v692 = vpop.f32.mrf.mxu0
  %v693 = vadd.f32 %v330, %v692
  %v694 = vpop.f32.mrf.mxu0
  %695 = vdwg.mxu0
  %696 = vmatpush.bf16.msra.mxu0 %v590
  %697 = vmatpush.bf16.msra.mxu0 %v586
  %698 = vmatpush.bf16.msra.mxu0 %v582
  %699 = vmatpush.bf16.msra.mxu0 %v578
  %700 = vmatpush.bf16.msra.mxu0 %v574
  %701 = vmatpush.bf16.msra.mxu0 %v570
  %702 = vmatpush.bf16.msra.mxu0 %v566
  %703 = vmatpush.bf16.msra.mxu0 %v562
  %704 = vmatmul.bf16.gmra.mxu0 %v262
  %v705 = vpop.f32.mrf.mxu0
  %v706 = vadd.f32 %v693, %v705
  %v707 = vpop.f32.mrf.mxu0
  %708 = vdwg.mxu0
  %709 = vmatpush.bf16.msra.mxu0 %v559
  %710 = vmatpush.bf16.msra.mxu0 %v555
  %711 = vmatpush.bf16.msra.mxu0 %v551
  %712 = vmatpush.bf16.msra.mxu0 %v547
  %713 = vmatpush.bf16.msra.mxu0 %v543
  %714 = vmatpush.bf16.msra.mxu0 %v539
  %715 = vmatpush.bf16.msra.mxu0 %v535
  %716 = vmatpush.bf16.msra.mxu0 %v531
  %717 = vmatmul.bf16.gmra.mxu0 %v261
  %v718 = vpop.f32.mrf.mxu0
  %v719 = vadd.f32 %v331, %v718
  %v720 = vpop.f32.mrf.mxu0
  %721 = vdwg.mxu0
  %722 = vmatpush.bf16.msra.mxu0 %v591
  %723 = vmatpush.bf16.msra.mxu0 %v587
  %724 = vmatpush.bf16.msra.mxu0 %v583
  %725 = vmatpush.bf16.msra.mxu0 %v579
  %726 = vmatpush.bf16.msra.mxu0 %v575
  %727 = vmatpush.bf16.msra.mxu0 %v571
  %728 = vmatpush.bf16.msra.mxu0 %v567
  %729 = vmatpush.bf16.msra.mxu0 %v563
  %730 = vmatmul.bf16.gmra.mxu0 %v262
  %v731 = vpop.f32.mrf.mxu0
  %v732 = vadd.f32 %v719, %v731
  %v733 = vpop.f32.mrf.mxu0
  %734 = vdwg.mxu0
  %735 = vmatpush.bf16.msra.mxu0 %v560
  %736 = vmatpush.bf16.msra.mxu0 %v556
  %737 = vmatpush.bf16.msra.mxu0 %v552
  %738 = vmatpush.bf16.msra.mxu0 %v548
  %739 = vmatpush.bf16.msra.mxu0 %v544
  %740 = vmatpush.bf16.msra.mxu0 %v540
  %741 = vmatpush.bf16.msra.mxu0 %v536
  %742 = vmatpush.bf16.msra.mxu0 %v532
  %743 = vmatmul.bf16.gmra.mxu0 %v261
  %v744 = vpop.f32.mrf.mxu0
  %v745 = vadd.f32 %v332, %v744
  %v746 = vpop.f32.mrf.mxu0
  %747 = vdwg.mxu0
  %748 = vmatpush.bf16.msra.mxu0 %v592
  %749 = vmatpush.bf16.msra.mxu0 %v588
  %750 = vmatpush.bf16.msra.mxu0 %v584
  %751 = vmatpush.bf16.msra.mxu0 %v580
  %752 = vmatpush.bf16.msra.mxu0 %v576
  %753 = vmatpush.bf16.msra.mxu0 %v572
  %754 = vmatpush.bf16.msra.mxu0 %v568
  %755 = vmatpush.bf16.msra.mxu0 %v564
  %756 = vmatmul.bf16.gmra.mxu0 %v262
  %v757 = vpop.f32.mrf.mxu0
  %v758 = vadd.f32 %v745, %v757
  %v759 = vpop.f32.mrf.mxu0
  %760 = vdwg.mxu0
  %v761 = vmul.f32 %v680, 0.2
  %v762 = vmul.f32 %v706, 0.2
  %v763 = vmul.f32 %v732, 0.2
  %v764 = vmul.f32 %v758, 0.2
  %v765 = vmax.f32 %v680, %v761
  %v766 = vmax.f32 %v706, %v762
  %v767 = vmax.f32 %v732, %v763
  %v768 = vmax.f32 %v758, %v764
  %v769 = vpack.c.bf16 %v765, %v765
  %v770 = vpack.c.bf16 %v766, %v766
  %v771 = vpack.c.bf16 %v767, %v767
  %v772 = vpack.c.bf16 %v768, %v768
  %v773 = vld [vmem:[%s7] sm:$0xff]
  %v774 = vld [vmem:[%s7 + $0x8] sm:$0xff]
  %v775 = vld [vmem:[%s7 + $0x10] sm:$0xff]
  %v776 = vld [vmem:[%s7 + $0x18] sm:$0xff]
  %v777 = vld [vmem:[%s7 + $0x20] sm:$0xff]
  %v778 = vld [vmem:[%s7 + $0x28] sm:$0xff]
  %v779 = vld [vmem:[%s7 + $0x30] sm:$0xff]
  %v780 = vld [vmem:[%s7 + $0x38] sm:$0xff]
  %v781 = vld [vmem:[%s7 + $0x40] sm:$0xff]
  %v782 = vld [vmem:[%s7 + $0x48] sm:$0xff]
  %v783 = vld [vmem:[%s7 + $0x50] sm:$0xff]
  %v784 = vld [vmem:[%s7 + $0x58] sm:$0xff]
  %v785 = vld [vmem:[%s7 + $0x60] sm:$0xff]
  %v786 = vld [vmem:[%s7 + $0x68] sm:$0xff]
  %v787 = vld [vmem:[%s7 + $0x70] sm:$0xff]
  %v788 = vld [vmem:[%s7 + $0x78] sm:$0xff]
  %v789 = vld [vmem:[%s7 + $0x80] sm:$0xff]
  %v790 = vld [vmem:[%s7 + $0x88] sm:$0xff]
  %v791 = vld [vmem:[%s7 + $0x90] sm:$0xff]
  %v792 = vld [vmem:[%s7 + $0x98] sm:$0xff]
  %v793 = vld [vmem:[%s7 + $0xa0] sm:$0xff]
  %v794 = vld [vmem:[%s7 + $0xa8] sm:$0xff]
  %v795 = vld [vmem:[%s7 + $0xb0] sm:$0xff]
  %v796 = vld [vmem:[%s7 + $0xb8] sm:$0xff]
  %v797 = vld [vmem:[%s7 + $0xc0] sm:$0xff]
  %v798 = vld [vmem:[%s7 + $0xc8] sm:$0xff]
  %v799 = vld [vmem:[%s7 + $0xd0] sm:$0xff]
  %v800 = vld [vmem:[%s7 + $0xd8] sm:$0xff]
  %v801 = vld [vmem:[%s7 + $0xe0] sm:$0xff]
  %v802 = vld [vmem:[%s7 + $0xe8] sm:$0xff]
  %v803 = vld [vmem:[%s7 + $0xf0] sm:$0xff]
  %v804 = vld [vmem:[%s7 + $0xf8] sm:$0xff]
  %v805 = vld [vmem:[%s7 + $0x100] sm:$0xff]
  %v806 = vld [vmem:[%s7 + $0x108] sm:$0xff]
  %v807 = vld [vmem:[%s7 + $0x110] sm:$0xff]
  %v808 = vld [vmem:[%s7 + $0x118] sm:$0xff]
  %v809 = vld [vmem:[%s7 + $0x120] sm:$0xff]
  %v810 = vld [vmem:[%s7 + $0x128] sm:$0xff]
  %v811 = vld [vmem:[%s7 + $0x130] sm:$0xff]
  %v812 = vld [vmem:[%s7 + $0x138] sm:$0xff]
  %v813 = vld [vmem:[%s7 + $0x140] sm:$0xff]
  %v814 = vld [vmem:[%s7 + $0x148] sm:$0xff]
  %v815 = vld [vmem:[%s7 + $0x150] sm:$0xff]
  %v816 = vld [vmem:[%s7 + $0x158] sm:$0xff]
  %v817 = vld [vmem:[%s7 + $0x160] sm:$0xff]
  %v818 = vld [vmem:[%s7 + $0x168] sm:$0xff]
  %v819 = vld [vmem:[%s7 + $0x170] sm:$0xff]
  %v820 = vld [vmem:[%s7 + $0x178] sm:$0xff]
  %v821 = vld [vmem:[%s7 + $0x180] sm:$0xff]
  %v822 = vld [vmem:[%s7 + $0x188] sm:$0xff]
  %v823 = vld [vmem:[%s7 + $0x190] sm:$0xff]
  %v824 = vld [vmem:[%s7 + $0x198] sm:$0xff]
  %v825 = vld [vmem:[%s7 + $0x1a0] sm:$0xff]
  %v826 = vld [vmem:[%s7 + $0x1a8] sm:$0xff]
  %v827 = vld [vmem:[%s7 + $0x1b0] sm:$0xff]
  %v828 = vld [vmem:[%s7 + $0x1b8] sm:$0xff]
  %v829 = vld [vmem:[%s7 + $0x1c0] sm:$0xff]
  %v830 = vld [vmem:[%s7 + $0x1c8] sm:$0xff]
  %v831 = vld [vmem:[%s7 + $0x1d0] sm:$0xff]
  %v832 = vld [vmem:[%s7 + $0x1d8] sm:$0xff]
  %v833 = vld [vmem:[%s7 + $0x1e0] sm:$0xff]
  %v834 = vld [vmem:[%s7 + $0x1e8] sm:$0xff]
  %v835 = vld [vmem:[%s7 + $0x1f0] sm:$0xff]
  %v836 = vld [vmem:[%s7 + $0x1f8] sm:$0xff]
  %v837 = vld [vmem:[%s8] sm:$0x3]
  %v839 = vperm.slane %v837, 0
  %v840 = vperm.slane %v837, 1
  %v907 = vunpack.c.l.b16 %v773
  %v908 = vunpack.c.h.b16 %v773
  %v909 = vunpack.c.l.b16 %v774
  %v910 = vunpack.c.h.b16 %v774
  %v911 = vunpack.c.l.b16 %v775
  %v912 = vunpack.c.h.b16 %v775
  %v913 = vunpack.c.l.b16 %v776
  %v914 = vunpack.c.h.b16 %v776
  %v915 = vunpack.c.l.b16 %v777
  %v916 = vunpack.c.h.b16 %v777
  %v917 = vunpack.c.l.b16 %v778
  %v918 = vunpack.c.h.b16 %v778
  %v919 = vunpack.c.l.b16 %v779
  %v920 = vunpack.c.h.b16 %v779
  %v921 = vunpack.c.l.b16 %v780
  %v922 = vunpack.c.h.b16 %v780
  %v923 = vunpack.c.l.b16 %v781
  %v924 = vunpack.c.h.b16 %v781
  %v925 = vunpack.c.l.b16 %v782
  %v926 = vunpack.c.h.b16 %v782
  %v927 = vunpack.c.l.b16 %v783
  %v928 = vunpack.c.h.b16 %v783
  %v929 = vunpack.c.l.b16 %v784
  %v930 = vunpack.c.h.b16 %v784
  %v931 = vunpack.c.l.b16 %v785
  %v932 = vunpack.c.h.b16 %v785
  %v933 = vunpack.c.l.b16 %v786
  %v934 = vunpack.c.h.b16 %v786
  %v935 = vunpack.c.l.b16 %v787
  %v936 = vunpack.c.h.b16 %v787
  %v937 = vunpack.c.l.b16 %v788
  %v938 = vunpack.c.h.b16 %v788
  %v939 = vunpack.c.l.b16 %v789
  %v940 = vunpack.c.h.b16 %v789
  %v941 = vunpack.c.l.b16 %v790
  %v942 = vunpack.c.h.b16 %v790
  %v943 = vunpack.c.l.b16 %v791
  %v944 = vunpack.c.h.b16 %v791
  %v945 = vunpack.c.l.b16 %v792
  %v946 = vunpack.c.h.b16 %v792
  %v947 = vunpack.c.l.b16 %v793
  %v948 = vunpack.c.h.b16 %v793
  %v949 = vunpack.c.l.b16 %v794
  %v950 = vunpack.c.h.b16 %v794
  %v951 = vunpack.c.l.b16 %v795
  %v952 = vunpack.c.h.b16 %v795
  %v953 = vunpack.c.l.b16 %v796
  %v954 = vunpack.c.h.b16 %v796
  %v955 = vunpack.c.l.b16 %v797
  %v956 = vunpack.c.h.b16 %v797
  %v957 = vunpack.c.l.b16 %v798
  %v958 = vunpack.c.h.b16 %v798
  %v959 = vunpack.c.l.b16 %v799
  %v960 = vunpack.c.h.b16 %v799
  %v961 = vunpack.c.l.b16 %v800
  %v962 = vunpack.c.h.b16 %v800
  %v963 = vunpack.c.l.b16 %v801
  %v964 = vunpack.c.h.b16 %v801
  %v965 = vunpack.c.l.b16 %v802
  %v966 = vunpack.c.h.b16 %v802
  %v967 = vunpack.c.l.b16 %v803
  %v968 = vunpack.c.h.b16 %v803
  %v969 = vunpack.c.l.b16 %v804
  %v970 = vunpack.c.h.b16 %v804
  %v971 = vunpack.c.l.b16 %v805
  %v972 = vunpack.c.h.b16 %v805
  %v973 = vunpack.c.l.b16 %v806
  %v974 = vunpack.c.h.b16 %v806
  %v975 = vunpack.c.l.b16 %v807
  %v976 = vunpack.c.h.b16 %v807
  %v977 = vunpack.c.l.b16 %v808
  %v978 = vunpack.c.h.b16 %v808
  %v979 = vunpack.c.l.b16 %v809
  %v980 = vunpack.c.h.b16 %v809
  %v981 = vunpack.c.l.b16 %v810
  %v982 = vunpack.c.h.b16 %v810
  %v983 = vunpack.c.l.b16 %v811
  %v984 = vunpack.c.h.b16 %v811
  %v985 = vunpack.c.l.b16 %v812
  %v986 = vunpack.c.h.b16 %v812
  %v987 = vunpack.c.l.b16 %v813
  %v988 = vunpack.c.h.b16 %v813
  %v989 = vunpack.c.l.b16 %v814
  %v990 = vunpack.c.h.b16 %v814
  %v991 = vunpack.c.l.b16 %v815
  %v992 = vunpack.c.h.b16 %v815
  %v993 = vunpack.c.l.b16 %v816
  %v994 = vunpack.c.h.b16 %v816
  %v995 = vunpack.c.l.b16 %v817
  %v996 = vunpack.c.h.b16 %v817
  %v997 = vunpack.c.l.b16 %v818
  %v998 = vunpack.c.h.b16 %v818
  %v999 = vunpack.c.l.b16 %v819
  %v1000 = vunpack.c.h.b16 %v819
  %v1001 = vunpack.c.l.b16 %v820
  %v1002 = vunpack.c.h.b16 %v820
  %v1003 = vunpack.c.l.b16 %v821
  %v1004 = vunpack.c.h.b16 %v821
  %v1005 = vunpack.c.l.b16 %v822
  %v1006 = vunpack.c.h.b16 %v822
  %v1007 = vunpack.c.l.b16 %v823
  %v1008 = vunpack.c.h.b16 %v823
  %v1009 = vunpack.c.l.b16 %v824
  %v1010 = vunpack.c.h.b16 %v824
  %v1011 = vunpack.c.l.b16 %v825
  %v1012 = vunpack.c.h.b16 %v825
  %v1013 = vunpack.c.l.b16 %v826
  %v1014 = vunpack.c.h.b16 %v826
  %v1015 = vunpack.c.l.b16 %v827
  %v1016 = vunpack.c.h.b16 %v827
  %v1017 = vunpack.c.l.b16 %v828
  %v1018 = vunpack.c.h.b16 %v828
  %v1019 = vunpack.c.l.b16 %v829
  %v1020 = vunpack.c.h.b16 %v829
  %v1021 = vunpack.c.l.b16 %v830
  %v1022 = vunpack.c.h.b16 %v830
  %v1023 = vunpack.c.l.b16 %v831
  %v1024 = vunpack.c.h.b16 %v831
  %v1025 = vunpack.c.l.b16 %v832
  %v1026 = vunpack.c.h.b16 %v832
  %v1027 = vunpack.c.l.b16 %v833
  %v1028 = vunpack.c.h.b16 %v833
  %v1029 = vunpack.c.l.b16 %v834
  %v1030 = vunpack.c.h.b16 %v834
  %v1031 = vunpack.c.l.b16 %v835
  %v1032 = vunpack.c.h.b16 %v835
  %v1033 = vunpack.c.l.b16 %v836
  %v1034 = vunpack.c.h.b16 %v836
  %v1035 = vpack.c.b16 %v909, %v907
  %v1036 = vpack.c.b16 %v910, %v908
  %v1037 = vpack.c.b16 %v913, %v911
  %v1038 = vpack.c.b16 %v914, %v912
  %v1039 = vpack.c.b16 %v917, %v915
  %v1040 = vpack.c.b16 %v918, %v916
  %v1041 = vpack.c.b16 %v921, %v919
  %v1042 = vpack.c.b16 %v922, %v920
  %v1043 = vpack.c.b16 %v925, %v923
  %v1044 = vpack.c.b16 %v926, %v924
  %v1045 = vpack.c.b16 %v929, %v927
  %v1046 = vpack.c.b16 %v930, %v928
  %v1047 = vpack.c.b16 %v933, %v931
  %v1048 = vpack.c.b16 %v934, %v932
  %v1049 = vpack.c.b16 %v937, %v935
  %v1050 = vpack.c.b16 %v938, %v936
  %v1051 = vpack.c.b16 %v941, %v939
  %v1052 = vpack.c.b16 %v942, %v940
  %v1053 = vpack.c.b16 %v945, %v943
  %v1054 = vpack.c.b16 %v946, %v944
  %v1055 = vpack.c.b16 %v949, %v947
  %v1056 = vpack.c.b16 %v950, %v948
  %v1057 = vpack.c.b16 %v953, %v951
  %v1058 = vpack.c.b16 %v954, %v952
  %v1059 = vpack.c.b16 %v957, %v955
  %v1060 = vpack.c.b16 %v958, %v956
  %v1061 = vpack.c.b16 %v961, %v959
  %v1062 = vpack.c.b16 %v962, %v960
  %v1063 = vpack.c.b16 %v965, %v963
  %v1064 = vpack.c.b16 %v966, %v964
  %v1065 = vpack.c.b16 %v969, %v967
  %v1066 = vpack.c.b16 %v970, %v968
  %v1067 = vpack.c.b16 %v973, %v971
  %v1068 = vpack.c.b16 %v974, %v972
  %v1069 = vpack.c.b16 %v977, %v975
  %v1070 = vpack.c.b16 %v978, %v976
  %v1071 = vpack.c.b16 %v981, %v979
  %v1072 = vpack.c.b16 %v982, %v980
  %v1073 = vpack.c.b16 %v985, %v983
  %v1074 = vpack.c.b16 %v986, %v984
  %v1075 = vpack.c.b16 %v989, %v987
  %v1076 = vpack.c.b16 %v990, %v988
  %v1077 = vpack.c.b16 %v993, %v991
  %v1078 = vpack.c.b16 %v994, %v992
  %v1079 = vpack.c.b16 %v997, %v995
  %v1080 = vpack.c.b16 %v998, %v996
  %v1081 = vpack.c.b16 %v1001, %v999
  %v1082 = vpack.c.b16 %v1002, %v1000
  %v1083 = vpack.c.b16 %v1005, %v1003
  %v1084 = vpack.c.b16 %v1006, %v1004
  %v1085 = vpack.c.b16 %v1009, %v1007
  %v1086 = vpack.c.b16 %v1010, %v1008
  %v1087 = vpack.c.b16 %v1013, %v1011
  %v1088 = vpack.c.b16 %v1014, %v1012
  %v1089 = vpack.c.b16 %v1017, %v1015
  %v1090 = vpack.c.b16 %v1018, %v1016
  %v1091 = vpack.c.b16 %v1021, %v1019
  %v1092 = vpack.c.b16 %v1022, %v1020
  %v1093 = vpack.c.b16 %v1025, %v1023
  %v1094 = vpack.c.b16 %v1026, %v1024
  %v1095 = vpack.c.b16 %v1029, %v1027
  %v1096 = vpack.c.b16 %v1030, %v1028
  %v1097 = vpack.c.b16 %v1033, %v1031
  %v1098 = vpack.c.b16 %v1034, %v1032
  %1163 = vmatpush.bf16.msra.mxu0 %v1049
  %1164 = vmatpush.bf16.msra.mxu0 %v1047
  %1165 = vmatpush.bf16.msra.mxu0 %v1045
  %1166 = vmatpush.bf16.msra.mxu0 %v1043
  %1167 = vmatpush.bf16.msra.mxu0 %v1041
  %1168 = vmatpush.bf16.msra.mxu0 %v1039
  %1169 = vmatpush.bf16.msra.mxu0 %v1037
  %1170 = vmatpush.bf16.msra.mxu0 %v1035
  %1171 = vmatmul.bf16.gmra.mxu0 %v769
  %v1172 = vpop.f32.mrf.mxu0
  %v1173 = vadd.f32 %v839, %v1172
  %v1174 = vpop.f32.mrf.mxu0
  %1175 = vdwg.mxu0
  %1176 = vmatpush.bf16.msra.mxu0 %v1065
  %1177 = vmatpush.bf16.msra.mxu0 %v1063
  %1178 = vmatpush.bf16.msra.mxu0 %v1061
  %1179 = vmatpush.bf16.msra.mxu0 %v1059
  %1180 = vmatpush.bf16.msra.mxu0 %v1057
  %1181 = vmatpush.bf16.msra.mxu0 %v1055
  %1182 = vmatpush.bf16.msra.mxu0 %v1053
  %1183 = vmatpush.bf16.msra.mxu0 %v1051
  %1184 = vmatmul.bf16.gmra.mxu0 %v770
  %v1185 = vpop.f32.mrf.mxu0
  %v1186 = vadd.f32 %v1173, %v1185
  %v1187 = vpop.f32.mrf.mxu0
  %1188 = vdwg.mxu0
  %1189 = vmatpush.bf16.msra.mxu0 %v1081
  %1190 = vmatpush.bf16.msra.mxu0 %v1079
  %1191 = vmatpush.bf16.msra.mxu0 %v1077
  %1192 = vmatpush.bf16.msra.mxu0 %v1075
  %1193 = vmatpush.bf16.msra.mxu0 %v1073
  %1194 = vmatpush.bf16.msra.mxu0 %v1071
  %1195 = vmatpush.bf16.msra.mxu0 %v1069
  %1196 = vmatpush.bf16.msra.mxu0 %v1067
  %1197 = vmatmul.bf16.gmra.mxu0 %v771
  %v1198 = vpop.f32.mrf.mxu0
  %v1199 = vadd.f32 %v1186, %v1198
  %v1200 = vpop.f32.mrf.mxu0
  %1201 = vdwg.mxu0
  %1202 = vmatpush.bf16.msra.mxu0 %v1097
  %1203 = vmatpush.bf16.msra.mxu0 %v1095
  %1204 = vmatpush.bf16.msra.mxu0 %v1093
  %1205 = vmatpush.bf16.msra.mxu0 %v1091
  %1206 = vmatpush.bf16.msra.mxu0 %v1089
  %1207 = vmatpush.bf16.msra.mxu0 %v1087
  %1208 = vmatpush.bf16.msra.mxu0 %v1085
  %1209 = vmatpush.bf16.msra.mxu0 %v1083
  %1210 = vmatmul.bf16.gmra.mxu0 %v772
  %v1211 = vpop.f32.mrf.mxu0
  %v1212 = vadd.f32 %v1199, %v1211
  %v1213 = vpop.f32.mrf.mxu0
  %1214 = vdwg.mxu0
  %1215 = vmatpush.bf16.msra.mxu0 %v1050
  %1216 = vmatpush.bf16.msra.mxu0 %v1048
  %1217 = vmatpush.bf16.msra.mxu0 %v1046
  %1218 = vmatpush.bf16.msra.mxu0 %v1044
  %1219 = vmatpush.bf16.msra.mxu0 %v1042
  %1220 = vmatpush.bf16.msra.mxu0 %v1040
  %1221 = vmatpush.bf16.msra.mxu0 %v1038
  %1222 = vmatpush.bf16.msra.mxu0 %v1036
  %1223 = vmatmul.bf16.gmra.mxu0 %v769
  %v1224 = vpop.f32.mrf.mxu0
  %v1225 = vadd.f32 %v840, %v1224
  %v1226 = vpop.f32.mrf.mxu0
  %1227 = vdwg.mxu0
  %1228 = vmatpush.bf16.msra.mxu0 %v1066
  %1229 = vmatpush.bf16.msra.mxu0 %v1064
  %1230 = vmatpush.bf16.msra.mxu0 %v1062
  %1231 = vmatpush.bf16.msra.mxu0 %v1060
  %1232 = vmatpush.bf16.msra.mxu0 %v1058
  %1233 = vmatpush.bf16.msra.mxu0 %v1056
  %1234 = vmatpush.bf16.msra.mxu0 %v1054
  %1235 = vmatpush.bf16.msra.mxu0 %v1052
  %1236 = vmatmul.bf16.gmra.mxu0 %v770
  %v1237 = vpop.f32.mrf.mxu0
  %v1238 = vadd.f32 %v1225, %v1237
  %v1239 = vpop.f32.mrf.mxu0
  %1240 = vdwg.mxu0
  %1241 = vmatpush.bf16.msra.mxu0 %v1082
  %1242 = vmatpush.bf16.msra.mxu0 %v1080
  %1243 = vmatpush.bf16.msra.mxu0 %v1078
  %1244 = vmatpush.bf16.msra.mxu0 %v1076
  %1245 = vmatpush.bf16.msra.mxu0 %v1074
  %1246 = vmatpush.bf16.msra.mxu0 %v1072
  %1247 = vmatpush.bf16.msra.mxu0 %v1070
  %1248 = vmatpush.bf16.msra.mxu0 %v1068
  %1249 = vmatmul.bf16.gmra.mxu0 %v771
  %v1250 = vpop.f32.mrf.mxu0
  %v1251 = vadd.f32 %v1238, %v1250
  %v1252 = vpop.f32.mrf.mxu0
  %1253 = vdwg.mxu0
  %1254 = vmatpush.bf16.msra.mxu0 %v1098
  %1255 = vmatpush.bf16.msra.mxu0 %v1096
  %1256 = vmatpush.bf16.msra.mxu0 %v1094
  %1257 = vmatpush.bf16.msra.mxu0 %v1092
  %1258 = vmatpush.bf16.msra.mxu0 %v1090
  %1259 = vmatpush.bf16.msra.mxu0 %v1088
  %1260 = vmatpush.bf16.msra.mxu0 %v1086
  %1261 = vmatpush.bf16.msra.mxu0 %v1084
  %1262 = vmatmul.bf16.gmra.mxu0 %v772
  %v1263 = vpop.f32.mrf.mxu0
  %v1264 = vadd.f32 %v1251, %v1263
  %v1265 = vpop.f32.mrf.mxu0
  %1266 = vdwg.mxu0
  %v1267 = vmul.f32 %v1212, 0.2
  %v1268 = vmul.f32 %v1264, 0.2
  %v1269 = vmax.f32 %v1212, %v1267
  %v1270 = vmax.f32 %v1264, %v1268
  %v1271 = vpack.c.bf16 %v1269, %v1269
  %v1272 = vpack.c.bf16 %v1270, %v1270
  %v1273 = vld [vmem:[%s9] sm:$0xf]
  %v1274 = vld [vmem:[%s9 + $0x4] sm:$0xf]
  %v1275 = vld [vmem:[%s9 + $0x8] sm:$0xf]
  %v1276 = vld [vmem:[%s9 + $0xc] sm:$0xf]
  %v1277 = vld [vmem:[%s9 + $0x10] sm:$0xf]
  %v1278 = vld [vmem:[%s9 + $0x14] sm:$0xf]
  %v1279 = vld [vmem:[%s9 + $0x18] sm:$0xf]
  %v1280 = vld [vmem:[%s9 + $0x1c] sm:$0xf]
  %v1281 = vld [vmem:[%s9 + $0x20] sm:$0xf]
  %v1282 = vld [vmem:[%s9 + $0x24] sm:$0xf]
  %v1283 = vld [vmem:[%s9 + $0x28] sm:$0xf]
  %v1284 = vld [vmem:[%s9 + $0x2c] sm:$0xf]
  %v1285 = vld [vmem:[%s9 + $0x30] sm:$0xf]
  %v1286 = vld [vmem:[%s9 + $0x34] sm:$0xf]
  %v1287 = vld [vmem:[%s9 + $0x38] sm:$0xf]
  %v1288 = vld [vmem:[%s9 + $0x3c] sm:$0xf]
  %v1289 = vld [vmem:[%s9 + $0x40] sm:$0xf]
  %v1290 = vld [vmem:[%s9 + $0x44] sm:$0xf]
  %v1291 = vld [vmem:[%s9 + $0x48] sm:$0xf]
  %v1292 = vld [vmem:[%s9 + $0x4c] sm:$0xf]
  %v1293 = vld [vmem:[%s9 + $0x50] sm:$0xf]
  %v1294 = vld [vmem:[%s9 + $0x54] sm:$0xf]
  %v1295 = vld [vmem:[%s9 + $0x58] sm:$0xf]
  %v1296 = vld [vmem:[%s9 + $0x5c] sm:$0xf]
  %v1297 = vld [vmem:[%s9 + $0x60] sm:$0xf]
  %v1298 = vld [vmem:[%s9 + $0x64] sm:$0xf]
  %v1299 = vld [vmem:[%s9 + $0x68] sm:$0xf]
  %v1300 = vld [vmem:[%s9 + $0x6c] sm:$0xf]
  %v1301 = vld [vmem:[%s9 + $0x70] sm:$0xf]
  %v1302 = vld [vmem:[%s9 + $0x74] sm:$0xf]
  %v1303 = vld [vmem:[%s9 + $0x78] sm:$0xf]
  %v1304 = vld [vmem:[%s9 + $0x7c] sm:$0xf]
  %v1305 = vld [vmem:[%s10] sm:$0x1]
  %v1307 = vperm.slane %v1305, 0
  %v1341 = vunpack.c.l.b16 %v1273
  %v1342 = vunpack.c.l.b16 %v1274
  %v1343 = vunpack.c.l.b16 %v1275
  %v1344 = vunpack.c.l.b16 %v1276
  %v1345 = vunpack.c.l.b16 %v1277
  %v1346 = vunpack.c.l.b16 %v1278
  %v1347 = vunpack.c.l.b16 %v1279
  %v1348 = vunpack.c.l.b16 %v1280
  %v1349 = vunpack.c.l.b16 %v1281
  %v1350 = vunpack.c.l.b16 %v1282
  %v1351 = vunpack.c.l.b16 %v1283
  %v1352 = vunpack.c.l.b16 %v1284
  %v1353 = vunpack.c.l.b16 %v1285
  %v1354 = vunpack.c.l.b16 %v1286
  %v1355 = vunpack.c.l.b16 %v1287
  %v1356 = vunpack.c.l.b16 %v1288
  %v1357 = vunpack.c.l.b16 %v1289
  %v1358 = vunpack.c.l.b16 %v1290
  %v1359 = vunpack.c.l.b16 %v1291
  %v1360 = vunpack.c.l.b16 %v1292
  %v1361 = vunpack.c.l.b16 %v1293
  %v1362 = vunpack.c.l.b16 %v1294
  %v1363 = vunpack.c.l.b16 %v1295
  %v1364 = vunpack.c.l.b16 %v1296
  %v1365 = vunpack.c.l.b16 %v1297
  %v1366 = vunpack.c.l.b16 %v1298
  %v1367 = vunpack.c.l.b16 %v1299
  %v1368 = vunpack.c.l.b16 %v1300
  %v1369 = vunpack.c.l.b16 %v1301
  %v1370 = vunpack.c.l.b16 %v1302
  %v1371 = vunpack.c.l.b16 %v1303
  %v1372 = vunpack.c.l.b16 %v1304
  %v1373 = vpack.c.b16 %v1342, %v1341
  %v1374 = vpack.c.b16 %v1344, %v1343
  %v1375 = vpack.c.b16 %v1346, %v1345
  %v1376 = vpack.c.b16 %v1348, %v1347
  %v1377 = vpack.c.b16 %v1350, %v1349
  %v1378 = vpack.c.b16 %v1352, %v1351
  %v1379 = vpack.c.b16 %v1354, %v1353
  %v1380 = vpack.c.b16 %v1356, %v1355
  %v1381 = vpack.c.b16 %v1358, %v1357
  %v1382 = vpack.c.b16 %v1360, %v1359
  %v1383 = vpack.c.b16 %v1362, %v1361
  %v1384 = vpack.c.b16 %v1364, %v1363
  %v1385 = vpack.c.b16 %v1366, %v1365
  %v1386 = vpack.c.b16 %v1368, %v1367
  %v1387 = vpack.c.b16 %v1370, %v1369
  %v1388 = vpack.c.b16 %v1372, %v1371
  %1405 = vmatpush.bf16.msra.mxu0 %v1380
  %1406 = vmatpush.bf16.msra.mxu0 %v1379
  %1407 = vmatpush.bf16.msra.mxu0 %v1378
  %1408 = vmatpush.bf16.msra.mxu0 %v1377
  %1409 = vmatpush.bf16.msra.mxu0 %v1376
  %1410 = vmatpush.bf16.msra.mxu0 %v1375
  %1411 = vmatpush.bf16.msra.mxu0 %v1374
  %1412 = vmatpush.bf16.msra.mxu0 %v1373
  %1413 = vmatmul.bf16.gmra.mxu0 %v1271
  %v1414 = vpop.f32.mrf.mxu0
  %v1415 = vadd.f32 %v1307, %v1414
  %v1416 = vpop.f32.mrf.mxu0
  %1417 = vdwg.mxu0
  %1418 = vmatpush.bf16.msra.mxu0 %v1388
  %1419 = vmatpush.bf16.msra.mxu0 %v1387
  %1420 = vmatpush.bf16.msra.mxu0 %v1386
  %1421 = vmatpush.bf16.msra.mxu0 %v1385
  %1422 = vmatpush.bf16.msra.mxu0 %v1384
  %1423 = vmatpush.bf16.msra.mxu0 %v1383
  %1424 = vmatpush.bf16.msra.mxu0 %v1382
  %1425 = vmatpush.bf16.msra.mxu0 %v1381
  %1426 = vmatmul.bf16.gmra.mxu0 %v1272
  %v1427 = vpop.f32.mrf.mxu0
  %v1428 = vadd.f32 %v1415, %v1427
  %v1429 = vpop.f32.mrf.mxu0
  %1430 = vdwg.mxu0
  %v1431 = vmul.f32 %v1428, 0.2
  %v1432 = vmax.f32 %v1428, %v1431
  %v1433 = vpack.c.bf16 %v1432, %v1432
  %v1434 = vld [vmem:[%s11] sm:$0xf]
  %v1435 = vld [vmem:[%s11 + $0x4] sm:$0xf]
  %v1436 = vld [vmem:[%s11 + $0x8] sm:$0xf]
  %v1437 = vld [vmem:[%s11 + $0xc] sm:$0xf]
  %v1438 = vld [vmem:[%s11 + $0x10] sm:$0xf]
  %v1439 = vld [vmem:[%s11 + $0x14] sm:$0xf]
  %v1440 = vld [vmem:[%s11 + $0x18] sm:$0xf]
  %v1441 = vld [vmem:[%s11 + $0x1c] sm:$0xf]
  %v1442 = vld [vmem:[%s11 + $0x20] sm:$0xf]
  %v1443 = vld [vmem:[%s11 + $0x24] sm:$0xf]
  %v1444 = vld [vmem:[%s11 + $0x28] sm:$0xf]
  %v1445 = vld [vmem:[%s11 + $0x2c] sm:$0xf]
  %v1446 = vld [vmem:[%s11 + $0x30] sm:$0xf]
  %v1447 = vld [vmem:[%s11 + $0x34] sm:$0xf]
  %v1448 = vld [vmem:[%s11 + $0x38] sm:$0xf]
  %v1449 = vld [vmem:[%s11 + $0x3c] sm:$0xf]
  %v1450 = vld [vmem:[%s12] sm:$0x1]
  %v1452 = vperm.slane %v1450, 0
  %v1470 = vunpack.c.l.b16 %v1434
  %v1471 = vunpack.c.l.b16 %v1435
  %v1472 = vunpack.c.l.b16 %v1436
  %v1473 = vunpack.c.l.b16 %v1437
  %v1474 = vunpack.c.l.b16 %v1438
  %v1475 = vunpack.c.l.b16 %v1439
  %v1476 = vunpack.c.l.b16 %v1440
  %v1477 = vunpack.c.l.b16 %v1441
  %v1478 = vunpack.c.l.b16 %v1442
  %v1479 = vunpack.c.l.b16 %v1443
  %v1480 = vunpack.c.l.b16 %v1444
  %v1481 = vunpack.c.l.b16 %v1445
  %v1482 = vunpack.c.l.b16 %v1446
  %v1483 = vunpack.c.l.b16 %v1447
  %v1484 = vunpack.c.l.b16 %v1448
  %v1485 = vunpack.c.l.b16 %v1449
  %v1486 = vpack.c.b16 %v1471, %v1470
  %v1487 = vpack.c.b16 %v1473, %v1472
  %v1488 = vpack.c.b16 %v1475, %v1474
  %v1489 = vpack.c.b16 %v1477, %v1476
  %v1490 = vpack.c.b16 %v1479, %v1478
  %v1491 = vpack.c.b16 %v1481, %v1480
  %v1492 = vpack.c.b16 %v1483, %v1482
  %v1493 = vpack.c.b16 %v1485, %v1484
  %1502 = vmatpush.bf16.msra.mxu0 %v1493
  %1503 = vmatpush.bf16.msra.mxu0 %v1492
  %1504 = vmatpush.bf16.msra.mxu0 %v1491
  %1505 = vmatpush.bf16.msra.mxu0 %v1490
  %1506 = vmatpush.bf16.msra.mxu0 %v1489
  %1507 = vmatpush.bf16.msra.mxu0 %v1488
  %1508 = vmatpush.bf16.msra.mxu0 %v1487
  %1509 = vmatpush.bf16.msra.mxu0 %v1486
  %1510 = vmatmul.bf16.gmra.mxu0 %v1433
  %v1511 = vpop.f32.mrf.mxu0
  %v1512 = vadd.f32 %v1452, %v1511
  %v1513 = vpop.f32.mrf.mxu0
  %1514 = vdwg.mxu0
  %v1515 = vxor.u32 %v1512, 2147483648
  %v1516 = vmul.f32 %v1515, 1.442695
  %v1517 = vpow.pop %v1516
  %v1518 = vadd.f32 %v1517, 1.0
  %v1519 = vrcp.pop %v1518
  %v1520 = vmul.f32 %v1518, %v1519
  %v1521 = vsub.f32 1.0, %v1520
  %v1522 = vmul.f32 %v1519, %v1521
  %v1523 = vadd.f32 %v1519, %v1522
  %vm1524 = vweird.f32 %v1518
  %vm1525 = vweird.f32 %v1519
  %vm1526 = vmor %vm1524, %vm1525
  %v1527 = vsel %vm1526, %v1519, %v1523
  %v1528 = vand.u32 2147483647, %v1518
  %vm1529 = vcmp.eq.f32.partialorder %v1528, 8.507059e+37
  %v1530 = vand.u32 %v1518, 2147483648
  %v1531 = vor.u32 1.1754944e-38, %v1530
  %v1532 = vsel %vm1529, %v1531, %v1527
  %v1533 = vmul.f32 1.0, %v1532
  %1534 = vst [vmem:[%s13] sm:$0xff] %v1533
  // Predicated region
  $region54: #{generator1_forward.1} parent=0 // pred_check
    _
  $region55: #{generator1_forward.1} parent=0 // pred_check_branch
    %1536 = sbr.rel (0) target = $region57
  $region56: #{generator1_forward.1} parent=0 // pred_region
    _
  $region57: #{generator1_forward.1} parent=0 // pred_fallthru
    _
  // Predicated region
  $region58: #{generator1_forward.1} parent=0 // pred_check
    _
  $region59: #{generator1_forward.1} parent=0 // pred_check_branch
    %1538 = sbr.rel (0) target = $region61
  $region60: #{generator1_forward.1} parent=0 // pred_region
    _
  $region61: #{generator1_forward.1} parent=0 // pred_fallthru
    _

</llo_original>
